<compile_context>
chip_gen: v7x
topology: tpu7x:2x2x1
jax: 0.10.0
libtpu: 0.0.40
codegen_flags: <defaults>
</compile_context>

<pallas_src>
import jax
import jax.numpy as jnp
from jax.experimental import pallas as pl
from jax.experimental.pallas import tpu as pltpu

LANE = 128
NEG_SLOPE = 0.2        # GATConv default negative_slope
MASK_NEG = -1e30       # additive mask bias for non-neighbours
D_COL = LANE - 1       # padded weight column that carries W @ att_dst^T


# --------------------------- shared layer math ------------------------------ #
def _gat_layer(mask_bias, x, w_ext, att_src, bias, *, in_kernel):
    """One GATConv layer on a block-diagonal supergraph.

    mask_bias: (P, P) f32, 0 for edges (incl. self loops) else -1e30.
    x:         (P, Cin) features (cast to bf16 for the MXU).
    w_ext:     (Cin, C_P) bf16; cols [0:C) = W, col D_COL = W @ att_dst^T, rest 0.
    att_src:   (1, C_P) bf16 zero-padded att_src vector.
    bias:      (1, C_P) f32 zero-padded bias.
    Shared by the Pallas kernel (in_kernel=True) and the JAX reference.
    """
    xb = x.astype(jnp.bfloat16)
    h = jnp.dot(xb, w_ext, preferred_element_type=jnp.float32)            # (P, C_P)
    hb = h.astype(jnp.bfloat16)

    d = h[:, D_COL:D_COL + 1]                                             # (P, 1)  h_i . att_dst (folded)
    s = jnp.einsum("oc,nc->on", att_src, hb,
                   preferred_element_type=jnp.float32)                    # (1, P)  h_j . att_src

    logits = d + s                                                        # (P, P)
    logits = jnp.where(logits >= 0.0, logits, NEG_SLOPE * logits)         # LeakyReLU
    logits = logits + mask_bias                                           # mask AFTER LeakyReLU
    logits = logits - jnp.max(logits, axis=-1, keepdims=True)
    p = jnp.exp(logits)
    denom = jnp.sum(p, axis=-1, keepdims=True)
    inv = pl.reciprocal(denom, approx=True) if in_kernel else 1.0 / denom
    attn = (p * inv).astype(jnp.bfloat16)                                 # row softmax

    out = jnp.dot(attn, hb, preferred_element_type=jnp.float32)           # (P, C_P)
    return out + bias


# ------------------------------ Pallas kernel -------------------------------- #
def gat_encoder_kernel(maskb_ref, x_ref,
                       w1_ref, as1_ref, b1_ref,
                       w2_ref, as2_ref, b2_ref,
                       o_ref):
    mask_bias = maskb_ref[0].astype(jnp.float32)     # (P, P); cast once, used by both layers
    x = x_ref[0]                                     # (P, Cin) bf16

    h = _gat_layer(mask_bias, x, w1_ref[...], as1_ref[...], b1_ref[...], in_kernel=True)
    h = jnp.maximum(h, 0.0)                          # ReLU between the two convs
    y = _gat_layer(mask_bias, h, w2_ref[...], as2_ref[...], b2_ref[...], in_kernel=True)

    o_ref[0] = y                                     # lane-dense (P, 128) f32 store


def gat_encoder_pallas(mask_bias, x, params):
    (w1, as1, b1, w2, as2, b2) = params
    G, P, cin = x.shape
    hidp = w1.shape[1]
    outp = w2.shape[1]

    per_group = lambda shape: pl.BlockSpec(shape, lambda g: (g, 0, 0))
    const2d = lambda shape: pl.BlockSpec(shape, lambda g: (0, 0))   # DMA'd once

    return pl.pallas_call(
        gat_encoder_kernel,
        out_shape=jax.ShapeDtypeStruct((G, P, outp), jnp.float32),
        grid=(G,),
        in_specs=[
            per_group((1, P, P)),       # additive mask bias (bf16)
            per_group((1, P, cin)),     # packed node features (bf16, true Cin width)
            const2d((cin, hidp)),       # W1_ext (att_dst1 folded into col 127)
            const2d((1, hidp)),         # att_src 1
            const2d((1, hidp)),         # bias 1
            const2d((hidp, outp)),      # W2_ext (att_dst2 folded into col 127)
            const2d((1, outp)),         # att_src 2
            const2d((1, outp)),         # bias 2
        ],
        out_specs=per_group((1, P, outp)),
        compiler_params=pltpu.CompilerParams(
            dimension_semantics=("parallel",)),   # >=2 steps -> both v7x TCs get work
    )(mask_bias, x, w1, as1, b1, w2, as2, b2)


# -------------------------------- JAX glue ----------------------------------- #
def dense_gat_mask(edge_index, num_nodes):
    """mask[i, j] = 1 iff edge j -> i (edge_index[0]=src, [1]=dst) + self loops.

    Note: duplicate parallel edges collapse to a single attention term here.
    """
    src, dst = edge_index[0], edge_index[1]
    m = jnp.zeros((num_nodes, num_nodes), jnp.float32).at[dst, src].set(1.0)
    idx = jnp.arange(num_nodes)
    return m.at[idx, idx].set(1.0)


def glorot(key, fan_in, fan_out, shape):
    lim = jnp.sqrt(6.0 / (fan_in + fan_out))
    return jax.random.uniform(key, shape, jnp.float32, -lim, lim)


def pad_axis(a, axis, size):
    pad = size - a.shape[axis]
    if pad <= 0:
        return a
    widths = [(0, 0)] * a.ndim
    widths[axis] = (0, pad)
    return jnp.pad(a, widths)


def fold_weight(w, att_dst, rows_p, cols_p):
    """Zero-pad W to (rows_p, cols_p) and write W @ att_dst^T into column D_COL."""
    cin, c = w.shape
    w_ext = jnp.zeros((rows_p, cols_p), jnp.float32)
    w_ext = w_ext.at[:cin, :c].set(w)
    w_ext = w_ext.at[:cin, D_COL].set((w @ att_dst.T)[:, 0])
    return w_ext.astype(jnp.bfloat16)


# ---------------------------------- main -------------------------------------- #
if __name__ == "__main__":
    B = 8              # graphs
    N = 16             # nodes per graph
    E = 40             # edges per graph
    IN_CH = 8          # in_channels
    OUT_CH = 16        # out_channels -> hidden = 2 * OUT_CH
    HID = 2 * OUT_CH
    GPS = 4            # graphs per grid step -> grid=(2,)
    assert B % GPS == 0
    G = B // GPS
    P = GPS * N        # 64 supergraph rows per grid step

    HID_P, OUT_P = LANE, LANE      # padded OUTPUT channel dims (lane-dense stores)

    key = jax.random.PRNGKey(0)
    k_x, k_e, k_p = jax.random.split(key, 3)

    # Node features and per-graph random edge lists.
    x = jax.random.normal(k_x, (B, N, IN_CH), jnp.float32)
    e_keys = jax.random.split(k_e, B)
    edge_index = jnp.stack(
        [jax.random.randint(k, (2, E), 0, N, dtype=jnp.int32) for k in e_keys])
    masks = jnp.stack([dense_gat_mask(edge_index[b], N) for b in range(B)])    # (B, N, N)

    # Block-diagonal supergraph mask -> additive bf16 bias (0 edge / -1e30 non-edge).
    mask_groups = jnp.stack([
        jax.scipy.linalg.block_diag(*[masks[g * GPS + k] for k in range(GPS)])
        for g in range(G)])                                                    # (G, P, P)
    mask_bias = jnp.where(mask_groups > 0.0, 0.0, MASK_NEG).astype(jnp.bfloat16)

    # GATConv parameters (glorot weights / attention vectors, zero bias).
    k_w1, k_a1s, k_a1d, k_w2, k_a2s, k_a2d = jax.random.split(k_p, 6)
    w1 = glorot(k_w1, IN_CH, HID, (IN_CH, HID))
    a1s = glorot(k_a1s, 1, HID, (1, HID))
    a1d = glorot(k_a1d, 1, HID, (1, HID))
    w2 = glorot(k_w2, HID, OUT_CH, (HID, OUT_CH))
    a2s = glorot(k_a2s, 1, OUT_CH, (1, OUT_CH))
    a2d = glorot(k_a2d, 1, OUT_CH, (1, OUT_CH))

    # Padded / folded kernel parameters.
    w1_ext = fold_weight(w1, a1d, IN_CH, HID_P)        # (8, 128)   bf16
    w2_ext = fold_weight(w2, a2d, HID_P, OUT_P)        # (128, 128) bf16
    a1s_p = pad_axis(a1s, 1, HID_P).astype(jnp.bfloat16)
    a2s_p = pad_axis(a2s, 1, OUT_P).astype(jnp.bfloat16)
    b1_p = jnp.zeros((1, HID_P), jnp.float32)
    b2_p = jnp.zeros((1, OUT_P), jnp.float32)
    params = (w1_ext, a1s_p, b1_p, w2_ext, a2s_p, b2_p)

    # Pack graphs into supergraph rows; contraction dim kept at true Cin, bf16.
    x_pack = x.reshape(G, P, IN_CH).astype(jnp.bfloat16)

    out_p = gat_encoder_pallas(mask_bias, x_pack, params)
    out_p = jax.block_until_ready(out_p)                       # (G, P, OUT_P)
    out = out_p.reshape(B, N, OUT_P)[:, :, :OUT_CH]

    # Reference 1: identical folded/padded math through plain XLA (tight check).
    def ref_group(mb, xg):
        mbf = mb.astype(jnp.float32)
        h = jnp.maximum(_gat_layer(mbf, xg, w1_ext, a1s_p, b1_p, in_kernel=False), 0.0)
        return _gat_layer(mbf, h, w2_ext, a2s_p, b2_p, in_kernel=False)

    ref = jax.vmap(ref_group)(mask_bias, x_pack).reshape(B, N, OUT_P)[:, :, :OUT_CH]

    # Reference 2: per-graph unfolded f32 GATConv (validates folding + packing).
    def gat_conv_f32(mask, xi, w, a_src, a_dst, b):
        h = xi @ w
        d = h @ a_dst.T                                        # (N, 1)
        s = (h @ a_src.T).T                                    # (1, N)
        e = d + s
        logits = jnp.where(e >= 0.0, e, NEG_SLOPE * e)
        logits = jnp.where(mask > 0.0, logits, MASK_NEG)
        logits = logits - jnp.max(logits, axis=-1, keepdims=True)
        p = jnp.exp(logits)
        attn = p / jnp.sum(p, axis=-1, keepdims=True)
        return attn @ h + b

    def ref_graph_f32(m, xi):
        h = jnp.maximum(gat_conv_f32(m, xi, w1, a1s, a1d, jnp.zeros((1, HID))), 0.0)
        return gat_conv_f32(m, h, w2, a2s, a2d, jnp.zeros((1, OUT_CH)))

    ref_f32 = jax.vmap(ref_graph_f32)(masks, x)                # (B, N, OUT_CH)

    assert out.shape == (B, N, OUT_CH)
    assert bool(jnp.allclose(out, ref, atol=1e-2, rtol=1e-2)), \
        "mismatch vs folded/padded XLA reference"
    assert bool(jnp.allclose(out, ref_f32, atol=1e-1, rtol=1e-1)), \
        "mismatch vs f32 GATConv reference"

    print("KERNEL_OK")
</pallas_src>

<mosaic_0001>
module attributes {stable_mosaic.version = 11 : i64} {
  func.func @gat_encoder_kernel(%arg0: i32, %arg1: memref<1x64x64xbf16, #tpu.memory_space<vmem>>, %arg2: memref<1x64x8xbf16, #tpu.memory_space<vmem>>, %arg3: memref<8x128xbf16, #tpu.memory_space<vmem>>, %arg4: memref<1x128xbf16, #tpu.memory_space<vmem>>, %arg5: memref<1x128xf32, #tpu.memory_space<vmem>>, %arg6: memref<128x128xbf16, #tpu.memory_space<vmem>>, %arg7: memref<1x128xbf16, #tpu.memory_space<vmem>>, %arg8: memref<1x128xf32, #tpu.memory_space<vmem>>, %arg9: memref<1x64x128xf32, #tpu.memory_space<vmem>>) attributes {dimension_semantics = [#tpu.dimension_semantics<parallel>], iteration_bounds = array<i64: 2>, scalar_prefetch = 0 : i64, scratch_operands = 0 : i64, tpu.core_type = #tpu.core_type<tc>, window_params = [{transform_indices = @transform_0, window_bounds = array<i64: 1, 64, 64>}, {transform_indices = @transform_1, window_bounds = array<i64: 1, 64, 8>}, {pipeline_mode = #tpu.pipeline_mode<synchronous>, transform_indices = @transform_2, window_bounds = array<i64: 8, 128>}, {pipeline_mode = #tpu.pipeline_mode<synchronous>, transform_indices = @transform_3, window_bounds = array<i64: 1, 128>}, {pipeline_mode = #tpu.pipeline_mode<synchronous>, transform_indices = @transform_4, window_bounds = array<i64: 1, 128>}, {pipeline_mode = #tpu.pipeline_mode<synchronous>, transform_indices = @transform_5, window_bounds = array<i64: 128, 128>}, {pipeline_mode = #tpu.pipeline_mode<synchronous>, transform_indices = @transform_6, window_bounds = array<i64: 1, 128>}, {pipeline_mode = #tpu.pipeline_mode<synchronous>, transform_indices = @transform_7, window_bounds = array<i64: 1, 128>}, {transform_indices = @transform_8, window_bounds = array<i64: 1, 64, 128>}]} {
    %c0 = arith.constant 0 : index
    %c0_0 = arith.constant 0 : index
    %c0_1 = arith.constant 0 : index
    %0 = vector.load %arg1[%c0, %c0_0, %c0_1] : memref<1x64x64xbf16, #tpu.memory_space<vmem>>, vector<1x64x64xbf16>
    %1 = vector.shape_cast %0 : vector<1x64x64xbf16> to vector<64x64xbf16>
    %2 = arith.extf %1 : vector<64x64xbf16> to vector<64x64xf32>
    %c0_2 = arith.constant 0 : index
    %c0_3 = arith.constant 0 : index
    %c0_4 = arith.constant 0 : index
    %3 = vector.load %arg2[%c0_2, %c0_3, %c0_4] : memref<1x64x8xbf16, #tpu.memory_space<vmem>>, vector<1x64x8xbf16>
    %4 = vector.shape_cast %3 : vector<1x64x8xbf16> to vector<64x8xbf16>
    %c0_5 = arith.constant 0 : index
    %c0_6 = arith.constant 0 : index
    %5 = vector.load %arg3[%c0_5, %c0_6] : memref<8x128xbf16, #tpu.memory_space<vmem>>, vector<8x128xbf16>
    %c0_7 = arith.constant 0 : index
    %c0_8 = arith.constant 0 : index
    %6 = vector.load %arg4[%c0_7, %c0_8] : memref<1x128xbf16, #tpu.memory_space<vmem>>, vector<1x128xbf16>
    %c0_9 = arith.constant 0 : index
    %c0_10 = arith.constant 0 : index
    %7 = vector.load %arg5[%c0_9, %c0_10] : memref<1x128xf32, #tpu.memory_space<vmem>>, vector<1x128xf32>
    %cst = arith.constant dense<0.000000e+00> : vector<64x128xf32>
    %8 = tpu.matmul %4, %5, %cst {dimension_numbers = #tpu.dot_dimension_numbers<[1], [0], [0], [1], [0, 0, 1, 1], [], []>} : vector<64x8xbf16>, vector<8x128xbf16>, vector<64x128xf32> -> vector<64x128xf32>
    %9 = arith.truncf %8 : vector<64x128xf32> to vector<64x128xbf16>
    %10 = vector.extract_strided_slice %8 {offsets = [0, 127], sizes = [64, 1], strides = [1, 1]} : vector<64x128xf32> to vector<64x1xf32>
    "tpu.trace_start"() <{level = 10 : i32, message = "oc,nc->on"}> : () -> ()
    %cst_11 = arith.constant dense<0.000000e+00> : vector<1x64xf32>
    %11 = tpu.matmul %6, %9, %cst_11 {dimension_numbers = #tpu.dot_dimension_numbers<[1], [1], [0], [0], [0, 0, 1, 0], [], []>} : vector<1x128xbf16>, vector<64x128xbf16>, vector<1x64xf32> -> vector<1x64xf32>
    "tpu.trace_stop"() : () -> ()
    %12 = vector.broadcast %10 : vector<64x1xf32> to vector<64x64xf32>
    %13 = vector.broadcast %11 : vector<1x64xf32> to vector<64x64xf32>
    %14 = arith.addf %12, %13 : vector<64x64xf32>
    %cst_12 = arith.constant 0.000000e+00 : f32
    %15 = vector.broadcast %cst_12 : f32 to vector<64x64xf32>
    %16 = arith.cmpf oge, %14, %15 : vector<64x64xf32>
    %cst_13 = arith.constant 2.000000e-01 : f32
    %17 = vector.broadcast %cst_13 : f32 to vector<64x64xf32>
    %18 = arith.mulf %17, %14 : vector<64x64xf32>
    %19 = arith.select %16, %14, %18 : vector<64x64xi1>, vector<64x64xf32>
    %20 = arith.addf %19, %2 : vector<64x64xf32>
    %cst_14 = arith.constant dense<0xFF800000> : vector<64xf32>
    %21 = vector.multi_reduction <maximumf>, %20, %cst_14 [1] : vector<64x64xf32> to vector<64xf32>
    %22 = vector.shape_cast %21 : vector<64xf32> to vector<64x1xf32>
    %23 = vector.broadcast %22 : vector<64x1xf32> to vector<64x64xf32>
    %24 = arith.subf %20, %23 : vector<64x64xf32>
    %25 = math.exp %24 : vector<64x64xf32>
    %cst_15 = arith.constant dense<0.000000e+00> : vector<64xf32>
    %26 = vector.multi_reduction <add>, %25, %cst_15 [1] : vector<64x64xf32> to vector<64xf32>
    %27 = vector.shape_cast %26 : vector<64xf32> to vector<64x1xf32>
    %28 = tpu.reciprocal %27 {approx = true} : vector<64x1xf32> -> vector<64x1xf32>
    %29 = vector.broadcast %28 : vector<64x1xf32> to vector<64x64xf32>
    %30 = arith.mulf %25, %29 : vector<64x64xf32>
    %31 = arith.truncf %30 : vector<64x64xf32> to vector<64x64xbf16>
    %cst_16 = arith.constant dense<0.000000e+00> : vector<64x128xf32>
    %32 = tpu.matmul %31, %9, %cst_16 {dimension_numbers = #tpu.dot_dimension_numbers<[1], [0], [0], [1], [0, 0, 1, 1], [], []>} : vector<64x64xbf16>, vector<64x128xbf16>, vector<64x128xf32> -> vector<64x128xf32>
    %33 = vector.broadcast %7 : vector<1x128xf32> to vector<64x128xf32>
    %34 = arith.addf %32, %33 : vector<64x128xf32>
    %cst_17 = arith.constant 0.000000e+00 : f32
    %35 = vector.broadcast %cst_17 : f32 to vector<64x128xf32>
    %36 = arith.maximumf %34, %35 : vector<64x128xf32>
    %c0_18 = arith.constant 0 : index
    %c0_19 = arith.constant 0 : index
    %37 = vector.load %arg6[%c0_18, %c0_19] : memref<128x128xbf16, #tpu.memory_space<vmem>>, vector<128x128xbf16>
    %c0_20 = arith.constant 0 : index
    %c0_21 = arith.constant 0 : index
    %38 = vector.load %arg7[%c0_20, %c0_21] : memref<1x128xbf16, #tpu.memory_space<vmem>>, vector<1x128xbf16>
    %c0_22 = arith.constant 0 : index
    %c0_23 = arith.constant 0 : index
    %39 = vector.load %arg8[%c0_22, %c0_23] : memref<1x128xf32, #tpu.memory_space<vmem>>, vector<1x128xf32>
    %40 = arith.truncf %36 : vector<64x128xf32> to vector<64x128xbf16>
    %cst_24 = arith.constant dense<0.000000e+00> : vector<64x128xf32>
    %41 = tpu.matmul %40, %37, %cst_24 {dimension_numbers = #tpu.dot_dimension_numbers<[1], [0], [0], [1], [0, 0, 1, 1], [], []>} : vector<64x128xbf16>, vector<128x128xbf16>, vector<64x128xf32> -> vector<64x128xf32>
    %42 = arith.truncf %41 : vector<64x128xf32> to vector<64x128xbf16>
    %43 = vector.extract_strided_slice %41 {offsets = [0, 127], sizes = [64, 1], strides = [1, 1]} : vector<64x128xf32> to vector<64x1xf32>
    "tpu.trace_start"() <{level = 10 : i32, message = "oc,nc->on"}> : () -> ()
    %cst_25 = arith.constant dense<0.000000e+00> : vector<1x64xf32>
    %44 = tpu.matmul %38, %42, %cst_25 {dimension_numbers = #tpu.dot_dimension_numbers<[1], [1], [0], [0], [0, 0, 1, 0], [], []>} : vector<1x128xbf16>, vector<64x128xbf16>, vector<1x64xf32> -> vector<1x64xf32>
    "tpu.trace_stop"() : () -> ()
    %45 = vector.broadcast %43 : vector<64x1xf32> to vector<64x64xf32>
    %46 = vector.broadcast %44 : vector<1x64xf32> to vector<64x64xf32>
    %47 = arith.addf %45, %46 : vector<64x64xf32>
    %cst_26 = arith.constant 0.000000e+00 : f32
    %48 = vector.broadcast %cst_26 : f32 to vector<64x64xf32>
    %49 = arith.cmpf oge, %47, %48 : vector<64x64xf32>
    %cst_27 = arith.constant 2.000000e-01 : f32
    %50 = vector.broadcast %cst_27 : f32 to vector<64x64xf32>
    %51 = arith.mulf %50, %47 : vector<64x64xf32>
    %52 = arith.select %49, %47, %51 : vector<64x64xi1>, vector<64x64xf32>
    %53 = arith.addf %52, %2 : vector<64x64xf32>
    %cst_28 = arith.constant dense<0xFF800000> : vector<64xf32>
    %54 = vector.multi_reduction <maximumf>, %53, %cst_28 [1] : vector<64x64xf32> to vector<64xf32>
    %55 = vector.shape_cast %54 : vector<64xf32> to vector<64x1xf32>
    %56 = vector.broadcast %55 : vector<64x1xf32> to vector<64x64xf32>
    %57 = arith.subf %53, %56 : vector<64x64xf32>
    %58 = math.exp %57 : vector<64x64xf32>
    %cst_29 = arith.constant dense<0.000000e+00> : vector<64xf32>
    %59 = vector.multi_reduction <add>, %58, %cst_29 [1] : vector<64x64xf32> to vector<64xf32>
    %60 = vector.shape_cast %59 : vector<64xf32> to vector<64x1xf32>
    %61 = tpu.reciprocal %60 {approx = true} : vector<64x1xf32> -> vector<64x1xf32>
    %62 = vector.broadcast %61 : vector<64x1xf32> to vector<64x64xf32>
    %63 = arith.mulf %58, %62 : vector<64x64xf32>
    %64 = arith.truncf %63 : vector<64x64xf32> to vector<64x64xbf16>
    %cst_30 = arith.constant dense<0.000000e+00> : vector<64x128xf32>
    %65 = tpu.matmul %64, %42, %cst_30 {dimension_numbers = #tpu.dot_dimension_numbers<[1], [0], [0], [1], [0, 0, 1, 1], [], []>} : vector<64x64xbf16>, vector<64x128xbf16>, vector<64x128xf32> -> vector<64x128xf32>
    %66 = vector.broadcast %39 : vector<1x128xf32> to vector<64x128xf32>
    %67 = arith.addf %65, %66 : vector<64x128xf32>
    %c0_31 = arith.constant 0 : index
    %c0_32 = arith.constant 0 : index
    %c0_33 = arith.constant 0 : index
    %68 = vector.load %arg9[%c0_31, %c0_32, %c0_33] : memref<1x64x128xf32, #tpu.memory_space<vmem>>, vector<1x64x128xf32>
    %69 = vector.shape_cast %68 : vector<1x64x128xf32> to vector<64x128xf32>
    %70 = vector.shape_cast %67 : vector<64x128xf32> to vector<1x64x128xf32>
    tpu.vector_store %arg9[%c0_31, %c0_32, %c0_33], %70 {strides = array<i32>} : memref<1x64x128xf32, #tpu.memory_space<vmem>>, vector<1x64x128xf32>,
    return
  }
  func.func @transform_0(%arg0: i32) -> (i32, i32, i32) {
    %c0_i32 = arith.constant 0 : i32
    %c0_i32_0 = arith.constant 0 : i32
    %c0_i32_1 = arith.constant 0 : i32
    return %arg0, %c0_i32, %c0_i32_0 : i32, i32, i32
  }
  func.func @transform_1(%arg0: i32) -> (i32, i32, i32) {
    %c0_i32 = arith.constant 0 : i32
    %c0_i32_0 = arith.constant 0 : i32
    %c0_i32_1 = arith.constant 0 : i32
    return %arg0, %c0_i32, %c0_i32_0 : i32, i32, i32
  }
  func.func @transform_2(%arg0: i32) -> (i32, i32) {
    %c0_i32 = arith.constant 0 : i32
    %c0_i32_0 = arith.constant 0 : i32
    %c0_i32_1 = arith.constant 0 : i32
    return %c0_i32, %c0_i32_0 : i32, i32
  }
  func.func @transform_3(%arg0: i32) -> (i32, i32) {
    %c0_i32 = arith.constant 0 : i32
    %c0_i32_0 = arith.constant 0 : i32
    %c0_i32_1 = arith.constant 0 : i32
    return %c0_i32, %c0_i32_0 : i32, i32
  }
  func.func @transform_4(%arg0: i32) -> (i32, i32) {
    %c0_i32 = arith.constant 0 : i32
    %c0_i32_0 = arith.constant 0 : i32
    %c0_i32_1 = arith.constant 0 : i32
    return %c0_i32, %c0_i32_0 : i32, i32
  }
  func.func @transform_5(%arg0: i32) -> (i32, i32) {
    %c0_i32 = arith.constant 0 : i32
    %c0_i32_0 = arith.constant 0 : i32
    %c0_i32_1 = arith.constant 0 : i32
    return %c0_i32, %c0_i32_0 : i32, i32
  }
  func.func @transform_6(%arg0: i32) -> (i32, i32) {
    %c0_i32 = arith.constant 0 : i32
    %c0_i32_0 = arith.constant 0 : i32
    %c0_i32_1 = arith.constant 0 : i32
    return %c0_i32, %c0_i32_0 : i32, i32
  }
  func.func @transform_7(%arg0: i32) -> (i32, i32) {
    %c0_i32 = arith.constant 0 : i32
    %c0_i32_0 = arith.constant 0 : i32
    %c0_i32_1 = arith.constant 0 : i32
    return %c0_i32, %c0_i32_0 : i32, i32
  }
  func.func @transform_8(%arg0: i32) -> (i32, i32, i32) {
    %c0_i32 = arith.constant 0 : i32
    %c0_i32_0 = arith.constant 0 : i32
    %c0_i32_1 = arith.constant 0 : i32
    return %arg0, %c0_i32, %c0_i32_0 : i32, i32, i32
  }
}

</mosaic_0001>

<llo_original>
// kernel: tpu_custom_call.1
$region0: #{tpu_custom_call.1}
  #allocation0 [shape = 'u32[]', space=smem, size = 0x4, offset = 0x4, fixed_abs, tag = 'smem constant byte address 0x4 - core index']
  #allocation1 [shape = 'u32[144,128]{1,0:T(1,128)}', space=vmem, size = 0x12000, scoped, tag = 'internal scratch']
  %s0 = inlined_call_operand.vmem [shape: bf16[2,64,64], index: 0, kind: input, shape index: {}]
  %s1 = inlined_call_operand.vmem [shape: bf16[2,64,8], index: 1, kind: input, shape index: {}]
  %s2 = inlined_call_operand.vmem [shape: bf16[8,128], index: 2, kind: input, shape index: {}]
  %s3 = inlined_call_operand.vmem [shape: bf16[1,128], index: 3, kind: input, shape index: {}]
  %s4 = inlined_call_operand.vmem [shape: f32[1,128], index: 4, kind: input, shape index: {}]
  %s5 = inlined_call_operand.hbm [shape: bf16[128,128], index: 5, kind: input, shape index: {}]
  %s6 = inlined_call_operand.vmem [shape: bf16[1,128], index: 6, kind: input, shape index: {}]
  %s7 = inlined_call_operand.vmem [shape: f32[1,128], index: 7, kind: input, shape index: {}]
  %s8 = inlined_call_operand.hbm [shape: f32[2,64,128], index: 8, kind: output, shape index: {}]
  %s9 = sld [smem:[#allocation0]]
  $region69: #{tpu_custom_call.1} parent=0
    _
  %s11 = ssub.s32 1, %s9
  %s12 = scalar_select 0, %s11, %s9
  $region1: #{tpu_custom_call.1} parent=0
    #allocation2 [shape = 'u8[32768]{0}', space=vmem, size = 0x8000, scoped, tag = 'input window, operand 5, single buffered']
    #allocation3 [shape = 's32[2]{0}', space=sflag, size = 0x8, scoped, tag = 'scoped memory for tpu_custom_call.1']
    #allocation4 [shape = 's32[2]{0}', space=sflag, size = 0x8, scoped, tag = 'scoped memory for tpu_custom_call.1']
    #allocation5 [shape = 'u8[65536]{0}', space=vmem, size = 0x10000, scoped, tag = 'output window, operand 0']
    %13 = vsyncpa [#allocation3], 0
    %14 = vsyncpa [#allocation4], 0
    %s15 = scalar_lea.sflag [#allocation4], 1
    %16 = vsyncpa %s15, 0
    loop: start=0, step=1, limit=4
    $region2: #{tpu_custom_call.1} parent=1 // loop_pre_header
      _
    $region3: #{tpu_custom_call.1} parent=1 // loop_header
      %s18 = sphi 0, %s22
      %p19 = scmp.ge.s32.totalorder %s18, 4
      %s28 = sphi 0, %s30
      %s31 = sphi 0, %s28
      %s32 = sphi 0, %s31
      %s48 = sphi 0, %s32
      %s54 = sphi 0, %s56
      %s57 = sphi 0, %s54
      %s58 = sphi 0, %s57
      %s74 = sphi 0, %s58
      %s78 = sphi 0, %s78
      %s80 = sphi 0, %s78
      %s81 = sphi 0, %s80
      %s95 = sphi 0, %s81
      %s99 = sphi 0, %s99
      %s101 = sphi 0, %s99
      %s102 = sphi 0, %s101
      %s116 = sphi 0, %s102
      %s120 = sphi 0, %s120
      %s122 = sphi 0, %s120
      %s123 = sphi 0, %s122
      %s137 = sphi 0, %s123
      %s141 = sphi 0, %s141
      %s143 = sphi 0, %s141
      %s144 = sphi 0, %s143
      %s158 = sphi 0, %s144
      %s162 = sphi 0, %s162
      %s164 = sphi 0, %s162
      %s165 = sphi 0, %s164
      %s179 = sphi 0, %s165
      %s183 = sphi 0, %s183
      %s185 = sphi 0, %s183
      %s186 = sphi 0, %s185
      %s200 = sphi 0, %s186
      %s206 = sphi 0, %s208
      %s209 = sphi 0, %s206
      %s210 = sphi 0, %s209
      %s226 = sphi 0, %s210
    $region4: #{tpu_custom_call.1} parent=1 // loop_header_branch
      %21 = sbr.rel (%p19) target = $region8
    $region5: #{tpu_custom_call.1} parent=1 // loop_body
      %s23 = ssub.s32 %s18, 1
      %s24 = ssub.s32 %s18, 2
      %s25 = sadd.s32 %s18, 1
      %s26 = ssub.s32 %s18, %s25
      %p27 = scmp.eq.s32.totalorder %s26, 0
      %s29 = sadd.s32 %s28, 1
      %s30 = scalar_select %p27, %s28, %s29
      %p33 = pneg %p27
      %p34 = scmp.eq.s32.totalorder %s18, 1
      %p35 = por %p33, %p34
      %p36 = scmp.ne.s32.totalorder %s28, %s31
      %p37 = scmp.eq.s32.totalorder %s18, 0
      %p38 = por %p36, %p37
      %p39 = scmp.ne.s32.totalorder %s28, %s31
      %p40 = scmp.eq.s32.totalorder %s23, 1
      %p41 = por %p39, %p40
      %p42 = scmp.ne.s32.totalorder %s31, %s32
      %p43 = scmp.eq.s32.totalorder %s23, 0
      %p44 = por %p42, %p43
      %p45 = scmp.ne.s32.totalorder %s31, %s32
      %p46 = scmp.eq.s32.totalorder %s24, 1
      %p47 = por %p45, %p46
      %p49 = scmp.ne.s32.totalorder %s32, %s48
      %p50 = scmp.eq.s32.totalorder %s24, 0
      %p51 = por %p49, %p50
      %s52 = ssub.s32 %s18, %s25
      %p53 = scmp.eq.s32.totalorder %s52, 0
      %s55 = sadd.s32 %s54, 1
      %s56 = scalar_select %p53, %s54, %s55
      %p59 = pneg %p53
      %p60 = scmp.eq.s32.totalorder %s18, 1
      %p61 = por %p59, %p60
      %p62 = scmp.ne.s32.totalorder %s54, %s57
      %p63 = scmp.eq.s32.totalorder %s18, 0
      %p64 = por %p62, %p63
      %p65 = scmp.ne.s32.totalorder %s54, %s57
      %p66 = scmp.eq.s32.totalorder %s23, 1
      %p67 = por %p65, %p66
      %p68 = scmp.ne.s32.totalorder %s57, %s58
      %p69 = scmp.eq.s32.totalorder %s23, 0
      %p70 = por %p68, %p69
      %p71 = scmp.ne.s32.totalorder %s57, %s58
      %p72 = scmp.eq.s32.totalorder %s24, 1
      %p73 = por %p71, %p72
      %p75 = scmp.ne.s32.totalorder %s58, %s74
      %p76 = scmp.eq.s32.totalorder %s24, 0
      %p77 = por %p75, %p76
      %s79 = sadd.s32 %s78, 1
      %p82 = scmp.eq.s32.totalorder %s18, 1
      %p83 = scmp.ne.s32.totalorder %s78, %s80
      %p84 = scmp.eq.s32.totalorder %s18, 0
      %p85 = por %p83, %p84
      %p86 = scmp.ne.s32.totalorder %s78, %s80
      %p87 = scmp.eq.s32.totalorder %s23, 1
      %p88 = por %p86, %p87
      %p89 = scmp.ne.s32.totalorder %s80, %s81
      %p90 = scmp.eq.s32.totalorder %s23, 0
      %p91 = por %p89, %p90
      %p92 = scmp.ne.s32.totalorder %s80, %s81
      %p93 = scmp.eq.s32.totalorder %s24, 1
      %p94 = por %p92, %p93
      %p96 = scmp.ne.s32.totalorder %s81, %s95
      %p97 = scmp.eq.s32.totalorder %s24, 0
      %p98 = por %p96, %p97
      %s100 = sadd.s32 %s99, 1
      %p103 = scmp.eq.s32.totalorder %s18, 1
      %p104 = scmp.ne.s32.totalorder %s99, %s101
      %p105 = scmp.eq.s32.totalorder %s18, 0
      %p106 = por %p104, %p105
      %p107 = scmp.ne.s32.totalorder %s99, %s101
      %p108 = scmp.eq.s32.totalorder %s23, 1
      %p109 = por %p107, %p108
      %p110 = scmp.ne.s32.totalorder %s101, %s102
      %p111 = scmp.eq.s32.totalorder %s23, 0
      %p112 = por %p110, %p111
      %p113 = scmp.ne.s32.totalorder %s101, %s102
      %p114 = scmp.eq.s32.totalorder %s24, 1
      %p115 = por %p113, %p114
      %p117 = scmp.ne.s32.totalorder %s102, %s116
      %p118 = scmp.eq.s32.totalorder %s24, 0
      %p119 = por %p117, %p118
      %s121 = sadd.s32 %s120, 1
      %p124 = scmp.eq.s32.totalorder %s18, 1
      %p125 = scmp.ne.s32.totalorder %s120, %s122
      %p126 = scmp.eq.s32.totalorder %s18, 0
      %p127 = por %p125, %p126
      %p128 = scmp.ne.s32.totalorder %s120, %s122
      %p129 = scmp.eq.s32.totalorder %s23, 1
      %p130 = por %p128, %p129
      %p131 = scmp.ne.s32.totalorder %s122, %s123
      %p132 = scmp.eq.s32.totalorder %s23, 0
      %p133 = por %p131, %p132
      %p134 = scmp.ne.s32.totalorder %s122, %s123
      %p135 = scmp.eq.s32.totalorder %s24, 1
      %p136 = por %p134, %p135
      %p138 = scmp.ne.s32.totalorder %s123, %s137
      %p139 = scmp.eq.s32.totalorder %s24, 0
      %p140 = por %p138, %p139
      %s142 = sadd.s32 %s141, 1
      %p145 = scmp.eq.s32.totalorder %s18, 1
      %p146 = scmp.ne.s32.totalorder %s141, %s143
      %p147 = scmp.eq.s32.totalorder %s18, 0
      %p148 = por %p146, %p147
      %p149 = scmp.ne.s32.totalorder %s141, %s143
      %p150 = scmp.eq.s32.totalorder %s23, 1
      %p151 = por %p149, %p150
      %p152 = scmp.ne.s32.totalorder %s143, %s144
      %p153 = scmp.eq.s32.totalorder %s23, 0
      %p154 = por %p152, %p153
      %p155 = scmp.ne.s32.totalorder %s143, %s144
      %p156 = scmp.eq.s32.totalorder %s24, 1
      %p157 = por %p155, %p156
      %p159 = scmp.ne.s32.totalorder %s144, %s158
      %p160 = scmp.eq.s32.totalorder %s24, 0
      %p161 = por %p159, %p160
      %s163 = sadd.s32 %s162, 1
      %p166 = scmp.eq.s32.totalorder %s18, 1
      %p167 = scmp.ne.s32.totalorder %s162, %s164
      %p168 = scmp.eq.s32.totalorder %s18, 0
      %p169 = por %p167, %p168
      %p170 = scmp.ne.s32.totalorder %s162, %s164
      %p171 = scmp.eq.s32.totalorder %s23, 1
      %p172 = por %p170, %p171
      %p173 = scmp.ne.s32.totalorder %s164, %s165
      %p174 = scmp.eq.s32.totalorder %s23, 0
      %p175 = por %p173, %p174
      %p176 = scmp.ne.s32.totalorder %s164, %s165
      %p177 = scmp.eq.s32.totalorder %s24, 1
      %p178 = por %p176, %p177
      %p180 = scmp.ne.s32.totalorder %s165, %s179
      %p181 = scmp.eq.s32.totalorder %s24, 0
      %p182 = por %p180, %p181
      %s184 = sadd.s32 %s183, 1
      %p187 = scmp.eq.s32.totalorder %s18, 1
      %p188 = scmp.ne.s32.totalorder %s183, %s185
      %p189 = scmp.eq.s32.totalorder %s18, 0
      %p190 = por %p188, %p189
      %p191 = scmp.ne.s32.totalorder %s183, %s185
      %p192 = scmp.eq.s32.totalorder %s23, 1
      %p193 = por %p191, %p192
      %p194 = scmp.ne.s32.totalorder %s185, %s186
      %p195 = scmp.eq.s32.totalorder %s23, 0
      %p196 = por %p194, %p195
      %p197 = scmp.ne.s32.totalorder %s185, %s186
      %p198 = scmp.eq.s32.totalorder %s24, 1
      %p199 = por %p197, %p198
      %p201 = scmp.ne.s32.totalorder %s186, %s200
      %p202 = scmp.eq.s32.totalorder %s24, 0
      %p203 = por %p201, %p202
      %s204 = ssub.s32 %s18, %s25
      %p205 = scmp.eq.s32.totalorder %s204, 0
      %s207 = sadd.s32 %s206, 1
      %s208 = scalar_select %p205, %s206, %s207
      %p211 = pneg %p205
      %p212 = scmp.eq.s32.totalorder %s18, 1
      %p213 = por %p211, %p212
      %p214 = scmp.ne.s32.totalorder %s206, %s209
      %p215 = scmp.eq.s32.totalorder %s18, 0
      %p216 = por %p214, %p215
      %p217 = scmp.ne.s32.totalorder %s206, %s209
      %p218 = scmp.eq.s32.totalorder %s23, 1
      %p219 = por %p217, %p218
      %p220 = scmp.ne.s32.totalorder %s209, %s210
      %p221 = scmp.eq.s32.totalorder %s23, 0
      %p222 = por %p220, %p221
      %p223 = scmp.ne.s32.totalorder %s209, %s210
      %p224 = scmp.eq.s32.totalorder %s24, 1
      %p225 = por %p223, %p224
      %p227 = scmp.ne.s32.totalorder %s210, %s226
      %p228 = scmp.eq.s32.totalorder %s24, 0
      %p229 = por %p227, %p228
      %p230 = scmp.le.s32.totalorder 1, %s18
      %p231 = scmp.lt.s32.totalorder %s18, 3
      %p232 = pnand %p230, %p231
      %p233 = pneg %p232
      // Predicated region
      $region9: #{tpu_custom_call.1} parent=5 // pred_check
        _
      $region10: #{tpu_custom_call.1} parent=5 // pred_check_branch
        %235 = sbr.rel (%p232) target = $region12
      $region11: #{tpu_custom_call.1} parent=5 // pred_region
        %s236 = ssub.s32 %s18, 1
        // Predicated region
        $region13: #{tpu_custom_call.1} parent=11 // pred_check
          %p237 = pneg %p91
        $region14: #{tpu_custom_call.1} parent=11 // pred_check_branch
          %239 = sbr.rel (%p237) target = $region16
        $region15: #{tpu_custom_call.1} parent=11 // pred_region
          _
        $region16: #{tpu_custom_call.1} parent=11 // pred_fallthru
          _
        // Predicated region
        $region17: #{tpu_custom_call.1} parent=11 // pred_check
          %p240 = pneg %p112
        $region18: #{tpu_custom_call.1} parent=11 // pred_check_branch
          %242 = sbr.rel (%p240) target = $region20
        $region19: #{tpu_custom_call.1} parent=11 // pred_region
          _
        $region20: #{tpu_custom_call.1} parent=11 // pred_fallthru
          _
        // Predicated region
        $region21: #{tpu_custom_call.1} parent=11 // pred_check
          %p243 = pneg %p133
        $region22: #{tpu_custom_call.1} parent=11 // pred_check_branch
          %245 = sbr.rel (%p243) target = $region24
        $region23: #{tpu_custom_call.1} parent=11 // pred_region
          _
        $region24: #{tpu_custom_call.1} parent=11 // pred_fallthru
          _
        // Predicated region
        $region25: #{tpu_custom_call.1} parent=11 // pred_check
          %p246 = pneg %p154
        $region26: #{tpu_custom_call.1} parent=11 // pred_check_branch
          %248 = sbr.rel (%p246) target = $region28
        $region27: #{tpu_custom_call.1} parent=11 // pred_region
          %s250 = ssub.s32 1024, 1024
          %251 = vsyncadd [#allocation3], %s250
          %s252 = sshll.u32 [#allocation2], 4
          %s253 = int_to_ptr.vmem [resolvable:$true] %s252
          %258 = dma.hbm_to_vmem [thread:$0]  %s5, 1024, %s253, [#allocation3], 64, 64, 4
        $region28: #{tpu_custom_call.1} parent=11 // pred_fallthru
          _
        // Predicated region
        $region29: #{tpu_custom_call.1} parent=11 // pred_check
          %p259 = pneg %p175
        $region30: #{tpu_custom_call.1} parent=11 // pred_check_branch
          %261 = sbr.rel (%p259) target = $region32
        $region31: #{tpu_custom_call.1} parent=11 // pred_region
          _
        $region32: #{tpu_custom_call.1} parent=11 // pred_fallthru
          _
        // Predicated region
        $region33: #{tpu_custom_call.1} parent=11 // pred_check
          %p262 = pneg %p196
        $region34: #{tpu_custom_call.1} parent=11 // pred_check_branch
          %264 = sbr.rel (%p262) target = $region36
        $region35: #{tpu_custom_call.1} parent=11 // pred_region
          _
        $region36: #{tpu_custom_call.1} parent=11 // pred_fallthru
          _
      $region12: #{tpu_custom_call.1} parent=5 // pred_fallthru
        _
      %p265 = scmp.lt.s32.totalorder %s18, 2
      // Predicated region
      $region37: #{tpu_custom_call.1} parent=5 // pred_check
        %p266 = pneg %p265
      $region38: #{tpu_custom_call.1} parent=5 // pred_check_branch
        %268 = sbr.rel (%p266) target = $region40
      $region39: #{tpu_custom_call.1} parent=5 // pred_region
        // Predicated region
        $region41: #{tpu_custom_call.1} parent=39 // pred_check
          %p269 = pneg %p38
        $region42: #{tpu_custom_call.1} parent=39 // pred_check_branch
          %271 = sbr.rel (%p269) target = $region44
        $region43: #{tpu_custom_call.1} parent=39 // pred_region
          %p272 = scmp.lt.s32.totalorder %s18, 1
          %s273 = scalar_select %p272, %s18, 1
          %s274 = smul.addr %s273, 8
          %s275 = smul.addr %s274, 4
          %s276 = scalar_lea.vmem %s0, %s275
        $region44: #{tpu_custom_call.1} parent=39 // pred_fallthru
          _
        // Predicated region
        $region45: #{tpu_custom_call.1} parent=39 // pred_check
          %p277 = pneg %p64
        $region46: #{tpu_custom_call.1} parent=39 // pred_check_branch
          %279 = sbr.rel (%p277) target = $region48
        $region47: #{tpu_custom_call.1} parent=39 // pred_region
          %p280 = scmp.lt.s32.totalorder %s18, 1
          %s281 = scalar_select %p280, %s18, 1
          %s282 = smul.addr %s281, 8
          %s283 = smul.addr %s282, 4
          %s284 = scalar_lea.vmem %s1, %s283
        $region48: #{tpu_custom_call.1} parent=39 // pred_fallthru
          _
      $region40: #{tpu_custom_call.1} parent=5 // pred_fallthru
        _
      %p285 = scmp.le.s32.totalorder 1, %s18
      %p286 = scmp.lt.s32.totalorder %s18, 3
      %p287 = pnand %p285, %p286
      %p288 = pneg %p287
      // Predicated region
      $region49: #{tpu_custom_call.1} parent=5 // pred_check
        _
      $region50: #{tpu_custom_call.1} parent=5 // pred_check_branch
        %290 = sbr.rel (%p287) target = $region52
      $region51: #{tpu_custom_call.1} parent=5 // pred_region
        %s291 = ssub.s32 %s18, 1
        // Predicated region
        $region53: #{tpu_custom_call.1} parent=51 // pred_check
          %p292 = pneg %p154
        $region54: #{tpu_custom_call.1} parent=51 // pred_check_branch
          %294 = sbr.rel (%p292) target = $region56
        $region55: #{tpu_custom_call.1} parent=51 // pred_region
          %295 = dma.done [#allocation3], 1024
        $region56: #{tpu_custom_call.1} parent=51 // pred_fallthru
          _
        %p296 = scmp.lt.s32.totalorder %s23, 1
        %s297 = scalar_select %p296, %s23, 1
        %s298 = smul.addr %s297, 8
        %s299 = smul.addr %s298, 4
        %s300 = scalar_lea.vmem %s0, %s299
        %p301 = pneg %p44
        %p302 = pneg %p41
        %p303 = scmp.lt.s32.totalorder %s23, 1
        %s304 = scalar_select %p303, %s23, 1
        %s305 = smul.addr %s304, 8
        %s306 = smul.addr %s305, 4
        %s307 = scalar_lea.vmem %s1, %s306
        %p308 = pneg %p70
        %p309 = pneg %p67
        %p310 = pneg %p91
        %p311 = pneg %p88
        %p312 = pneg %p112
        %p313 = pneg %p109
        %p314 = pneg %p133
        %p315 = pneg %p130
        %p316 = pneg %p154
        %p317 = pneg %p151
        %p318 = pneg %p175
        %p319 = pneg %p172
        %p320 = pneg %p196
        %p321 = pneg %p193
        %p322 = pneg %p222
        %p323 = pneg %p219
        %s324 = sand.u32 %s209, 1
        %s325 = scalar_lea.sflag [#allocation4], %s324
        %s326 = sand.u32 %s209, 1
        %s327 = smul.addr %s326, 64
        %s328 = scalar_lea.vmem [#allocation5], %s327
        %p329 = scmp.lt.s32.totalorder %s23, 1
        %s330 = scalar_select %p329, %s23, 1
        %s331 = smul.addr %s330, 8
        %s332 = smul.addr %s331, 4
        %s333 = scalar_lea.vmem %s0, %s332
        %p334 = scmp.lt.s32.totalorder %s23, 1
        %s335 = scalar_select %p334, %s23, 1
        %s336 = smul.addr %s335, 8
        %s337 = smul.addr %s336, 4
        %s338 = scalar_lea.vmem %s1, %s337
        %v340 = vld [vmem:[%s333] sm:$0xf]
        %v341 = vld [vmem:[%s333 + $0x4] sm:$0xf]
        %v342 = vld [vmem:[%s333 + $0x8] sm:$0xf]
        %v343 = vld [vmem:[%s333 + $0xc] sm:$0xf]
        %v344 = vld [vmem:[%s333 + $0x10] sm:$0xf]
        %v345 = vld [vmem:[%s333 + $0x14] sm:$0xf]
        %v346 = vld [vmem:[%s333 + $0x18] sm:$0xf]
        %v347 = vld [vmem:[%s333 + $0x1c] sm:$0xf]
        %v348 = vunpack.c.l.bf16 %v340
        %v349 = vunpack.c.l.bf16 %v341
        %v350 = vunpack.c.l.bf16 %v342
        %v351 = vunpack.c.l.bf16 %v343
        %v352 = vunpack.c.l.bf16 %v344
        %v353 = vunpack.c.l.bf16 %v345
        %v354 = vunpack.c.l.bf16 %v346
        %v355 = vunpack.c.l.bf16 %v347
        %v356 = vld [vmem:[%s338] sm:$0xf]
        %v357 = vld [vmem:[%s338 + $0x4] sm:$0xf]
        %v358 = vld [vmem:[%s338 + $0x8] sm:$0xf]
        %v359 = vld [vmem:[%s338 + $0xc] sm:$0xf]
        %v360 = vld [vmem:[%s338 + $0x10] sm:$0xf]
        %v361 = vld [vmem:[%s338 + $0x14] sm:$0xf]
        %v362 = vld [vmem:[%s338 + $0x18] sm:$0xf]
        %v363 = vld [vmem:[%s338 + $0x1c] sm:$0xf]
        %v364 = vld [vmem:[%s2] sm:$0xf]
        %v365 = vld [vmem:[%s3] sm:$0x1]
        %v366 = vld [vmem:[%s4] sm:$0x1]
        %v375 = vunpack.c.l.b16 %v356
        %v376 = vunpack.c.l.b16 %v357
        %v377 = vunpack.c.l.b16 %v358
        %v378 = vunpack.c.l.b16 %v359
        %v379 = vunpack.c.l.b16 %v360
        %v380 = vunpack.c.l.b16 %v361
        %v381 = vunpack.c.l.b16 %v362
        %v382 = vunpack.c.l.b16 %v363
        %v383 = vpack.c.b16 %v376, %v375
        %v384 = vpack.c.b16 %v378, %v377
        %v385 = vpack.c.b16 %v380, %v379
        %v386 = vpack.c.b16 %v382, %v381
        %vm387 = vcmask 64512
        %v389 = vsel %vm387, %v383, 0
        %v392 = vsel %vm387, %v384, 0
        %v395 = vsel %vm387, %v385, 0
        %v398 = vsel %vm387, %v386, 0
        %vm400 = vcmask 1043456
        %v402 = vsel %vm400, %v364, 0
        %404 = vmatprep.subr.bf16.mxu0 0
        %405 = vmatpush1.bf16.msra.mxu0 %v402
        %406 = vmatprep.subr.bf16.mxu0 0
        %407 = vmatpush1.bf16.msra.mxu0 0
        %408 = vmatprep.subr.bf16.mxu0 0
        %409 = vmatpush1.bf16.msra.mxu0 0
        %410 = vmatprep.subr.bf16.mxu0 0
        %411 = vmatpush1.bf16.msra.mxu0 0
        %412 = vmatprep.subr.bf16.mxu0 0
        %413 = vmatpush1.bf16.msra.mxu0 0
        %414 = vmatprep.subr.bf16.mxu0 0
        %415 = vmatpush1.bf16.msra.mxu0 0
        %416 = vmatprep.subr.bf16.mxu0 0
        %417 = vmatpush1.bf16.msra.mxu0 0
        %418 = vmatprep.subr.bf16.mxu0 0
        %419 = vmatpush1.bf16.msra.mxu0 0
        %420 = vmatprep.subr.bf16.mxu0 0
        %421 = vmatpush1.bf16.msra.mxu0 0
        %422 = vmatprep.subr.bf16.mxu0 0
        %423 = vmatpush1.bf16.msra.mxu0 0
        %424 = vmatprep.subr.bf16.mxu0 0
        %425 = vmatpush1.bf16.msra.mxu0 0
        %426 = vmatprep.subr.bf16.mxu0 0
        %427 = vmatpush1.bf16.msra.mxu0 0
        %428 = vmatprep.subr.bf16.mxu0 0
        %429 = vmatpush1.bf16.msra.mxu0 0
        %430 = vmatprep.subr.bf16.mxu0 0
        %431 = vmatpush1.bf16.msra.mxu0 0
        %432 = vmatprep.subr.bf16.mxu0 0
        %433 = vmatpush1.bf16.msra.mxu0 0
        %434 = vmatprep.subr.bf16.mxu0 0
        %435 = vmatpush1.bf16.msra.mxu0 0
        %436 = vmatprep.mubr.bf16.mxu0 0
        %437 = vmatmul.mubr.bf16.gmra.mrb[0].mxu0 %v389
        %v438 = vpop.f32.mrb[0].mxu0
        %v439 = vadd.f32 0.0, %v438
        %v440 = vpop.f32.mrb[0].mxu0
        %v441 = vpop.f32.mrb[0].mxu0
        %v442 = vadd.f32 0.0, %v441
        %v443 = vpop.f32.mrb[0].mxu0
        %444 = vmatprep.mubr.bf16.mxu0 0
        %445 = vmatmul.mubr.bf16.gmra.mrb[0].mxu0 %v392
        %v446 = vpop.f32.mrb[0].mxu0
        %v447 = vadd.f32 0.0, %v446
        %v448 = vpop.f32.mrb[0].mxu0
        %v449 = vpop.f32.mrb[0].mxu0
        %v450 = vadd.f32 0.0, %v449
        %v451 = vpop.f32.mrb[0].mxu0
        %452 = vmatprep.mubr.bf16.mxu0 0
        %453 = vmatmul.mubr.bf16.gmra.mrb[0].mxu0 %v395
        %v454 = vpop.f32.mrb[0].mxu0
        %v455 = vadd.f32 0.0, %v454
        %v456 = vpop.f32.mrb[0].mxu0
        %v457 = vpop.f32.mrb[0].mxu0
        %v458 = vadd.f32 0.0, %v457
        %v459 = vpop.f32.mrb[0].mxu0
        %460 = vmatprep.mubr.bf16.mxu0 0
        %461 = vmatmul.mubr.bf16.gmra.mrb[0].mxu0 %v398
        %v462 = vpop.f32.mrb[0].mxu0
        %v463 = vadd.f32 0.0, %v462
        %v464 = vpop.f32.mrb[0].mxu0
        %v465 = vpop.f32.mrb[0].mxu0
        %v466 = vadd.f32 0.0, %v465
        %v467 = vpop.f32.mrb[0].mxu0
        %468 = vdwg.mxu0
        %v469 = vpack.c.bf16 %v442, %v439
        %v470 = vpack.c.bf16 %v450, %v447
        %v471 = vpack.c.bf16 %v458, %v455
        %v472 = vpack.c.bf16 %v466, %v463
        %473 = vmatprep.subr.bf16.mxu0 0
        %474 = vmatpush1.bf16.xpose.msra.mxu0 %v469
        %475 = vmatprep.subr.bf16.mxu0 0
        %476 = vmatpush1.bf16.xpose.msra.mxu0 %v470
        %477 = vmatprep.subr.bf16.mxu0 0
        %478 = vmatpush1.bf16.xpose.msra.mxu0 %v471
        %479 = vmatprep.subr.bf16.mxu0 0
        %480 = vmatpush1.bf16.xpose.msra.mxu0 %v472
        %481 = vmatprep.subr.bf16.mxu0 0
        %482 = vmatpush1.bf16.xpose.msra.mxu0 0
        %483 = vmatprep.subr.bf16.mxu0 0
        %484 = vmatpush1.bf16.xpose.msra.mxu0 0
        %485 = vmatprep.subr.bf16.mxu0 0
        %486 = vmatpush1.bf16.xpose.msra.mxu0 0
        %487 = vmatprep.subr.bf16.mxu0 0
        %488 = vmatpush1.bf16.xpose.msra.mxu0 0
        %489 = vmatprep.subr.bf16.mxu0 0
        %490 = vmatpush1.bf16.xpose.msra.mxu0 0
        %491 = vmatprep.subr.bf16.mxu0 0
        %492 = vmatpush1.bf16.xpose.msra.mxu0 0
        %493 = vmatprep.subr.bf16.mxu0 0
        %494 = vmatpush1.bf16.xpose.msra.mxu0 0
        %495 = vmatprep.subr.bf16.mxu0 0
        %496 = vmatpush1.bf16.xpose.msra.mxu0 0
        %497 = vmatprep.subr.bf16.mxu0 0
        %498 = vmatpush1.bf16.xpose.msra.mxu0 0
        %499 = vmatprep.subr.bf16.mxu0 0
        %500 = vmatpush1.bf16.xpose.msra.mxu0 0
        %501 = vmatprep.subr.bf16.mxu0 0
        %502 = vmatpush1.bf16.xpose.msra.mxu0 0
        %503 = vmatprep.subr.bf16.mxu0 0
        %504 = vmatpush1.bf16.xpose.msra.mxu0 0
        %505 = vmatprep.mubr.bf16.mxu0 0
        %506 = vmatmul.mubr.bf16.gmra.mrb[0].mxu0 %v365
        %v507 = vpop.f32.mrb[0].mxu0
        %v508 = vadd.f32 0.0, %v507
        %v509 = vpop.f32.mrb[0].mxu0
        %v510 = vpop.f32.mrb[0].mxu0
        %v511 = vpop.f32.mrb[0].mxu0
        %512 = vdwg.mxu0
        %514 = vset.pattern.permute.xlu0 127
        %515 = vperm.xlu0 %514, %v439
        %v516 = vpop.permute.xlu0 %515
        %519 = vset.pattern.permute.xlu0 127
        %520 = vperm.xlu0 %519, %v442
        %v521 = vpop.permute.xlu0 %520
        %524 = vset.pattern.permute.xlu0 127
        %525 = vperm.xlu0 %524, %v447
        %v526 = vpop.permute.xlu0 %525
        %529 = vset.pattern.permute.xlu0 127
        %530 = vperm.xlu0 %529, %v450
        %v531 = vpop.permute.xlu0 %530
        %534 = vset.pattern.permute.xlu0 127
        %535 = vperm.xlu0 %534, %v455
        %v536 = vpop.permute.xlu0 %535
        %539 = vset.pattern.permute.xlu0 127
        %540 = vperm.xlu0 %539, %v458
        %v541 = vpop.permute.xlu0 %540
        %544 = vset.pattern.permute.xlu0 127
        %545 = vperm.xlu0 %544, %v463
        %v546 = vpop.permute.xlu0 %545
        %549 = vset.pattern.permute.xlu0 127
        %550 = vperm.xlu0 %549, %v466
        %v551 = vpop.permute.xlu0 %550
        %v553 = vlaneseq
        %v554 = vshrl.u32 %v553, 7
        %v555 = vsub.s32 0, %v554
        %v556 = vrot.slane %v508, %v555
        %v557 = vadd.f32 %v516, %v556
        %v558 = vadd.f32 %v521, %v556
        %v559 = vadd.f32 %v526, %v556
        %v560 = vadd.f32 %v531, %v556
        %v561 = vadd.f32 %v536, %v556
        %v562 = vadd.f32 %v541, %v556
        %v563 = vadd.f32 %v546, %v556
        %v564 = vadd.f32 %v551, %v556
        %vm565 = vcmp.ge.f32.partialorder %v557, 0.0
        %vm566 = vcmp.ge.f32.partialorder %v558, 0.0
        %vm567 = vcmp.ge.f32.partialorder %v559, 0.0
        %vm568 = vcmp.ge.f32.partialorder %v560, 0.0
        %vm569 = vcmp.ge.f32.partialorder %v561, 0.0
        %vm570 = vcmp.ge.f32.partialorder %v562, 0.0
        %vm571 = vcmp.ge.f32.partialorder %v563, 0.0
        %vm572 = vcmp.ge.f32.partialorder %v564, 0.0
        %v573 = vmul.f32 %v557, 0.2
        %v574 = vmul.f32 %v558, 0.2
        %v575 = vmul.f32 %v559, 0.2
        %v576 = vmul.f32 %v560, 0.2
        %v577 = vmul.f32 %v561, 0.2
        %v578 = vmul.f32 %v562, 0.2
        %v579 = vmul.f32 %v563, 0.2
        %v580 = vmul.f32 %v564, 0.2
        %v581 = vsel %vm565, %v557, %v573
        %v582 = vsel %vm566, %v558, %v574
        %v583 = vsel %vm567, %v559, %v575
        %v584 = vsel %vm568, %v560, %v576
        %v585 = vsel %vm569, %v561, %v577
        %v586 = vsel %vm570, %v562, %v578
        %v587 = vsel %vm571, %v563, %v579
        %v588 = vsel %vm572, %v564, %v580
        %v589 = vadd.f32 %v581, %v348
        %v590 = vadd.f32 %v582, %v349
        %v591 = vadd.f32 %v583, %v350
        %v592 = vadd.f32 %v584, %v351
        %v593 = vadd.f32 %v585, %v352
        %v594 = vadd.f32 %v586, %v353
        %v595 = vadd.f32 %v587, %v354
        %v596 = vadd.f32 %v588, %v355
        %vm597 = vcmask 523264
        %v598 = vsel %vm597, %v589, -inf
        %599 = vmax.xlane.f32.xlu0 %v598
        %v600 = vpop.xlane.xlu0 %599
        %v601 = vsel %vm597, %v590, -inf
        %602 = vmax.xlane.f32.xlu0 %v601
        %v603 = vpop.xlane.xlu0 %602
        %v604 = vsel %vm597, %v591, -inf
        %605 = vmax.xlane.f32.xlu0 %v604
        %v606 = vpop.xlane.xlu0 %605
        %v607 = vsel %vm597, %v592, -inf
        %608 = vmax.xlane.f32.xlu0 %v607
        %v609 = vpop.xlane.xlu0 %608
        %v610 = vsel %vm597, %v593, -inf
        %611 = vmax.xlane.f32.xlu0 %v610
        %v612 = vpop.xlane.xlu0 %611
        %v613 = vsel %vm597, %v594, -inf
        %614 = vmax.xlane.f32.xlu0 %v613
        %v615 = vpop.xlane.xlu0 %614
        %v616 = vsel %vm597, %v595, -inf
        %617 = vmax.xlane.f32.xlu0 %v616
        %v618 = vpop.xlane.xlu0 %617
        %v619 = vsel %vm597, %v596, -inf
        %620 = vmax.xlane.f32.xlu0 %v619
        %v621 = vpop.xlane.xlu0 %620
        %v622 = vsub.f32 %v589, %v600
        %v623 = vsub.f32 %v590, %v603
        %v624 = vsub.f32 %v591, %v606
        %v625 = vsub.f32 %v592, %v609
        %v626 = vsub.f32 %v593, %v612
        %v627 = vsub.f32 %v594, %v615
        %v628 = vsub.f32 %v595, %v618
        %v629 = vsub.f32 %v596, %v621
        %v630 = vmul.f32 %v622, 1.442695
        %v631 = vpow.pop %v630
        %v632 = vmul.f32 %v623, 1.442695
        %v633 = vpow.pop %v632
        %v634 = vmul.f32 %v624, 1.442695
        %v635 = vpow.pop %v634
        %v636 = vmul.f32 %v625, 1.442695
        %v637 = vpow.pop %v636
        %v638 = vmul.f32 %v626, 1.442695
        %v639 = vpow.pop %v638
        %v640 = vmul.f32 %v627, 1.442695
        %v641 = vpow.pop %v640
        %v642 = vmul.f32 %v628, 1.442695
        %v643 = vpow.pop %v642
        %v644 = vmul.f32 %v629, 1.442695
        %v645 = vpow.pop %v644
        %v646 = vsel %vm597, %v631, 0.0
        %647 = vadd.xlane.f32.xlu0 %v646
        %v648 = vpop.xlane.xlu0 %647
        %v649 = vsel %vm597, %v633, 0.0
        %650 = vadd.xlane.f32.xlu0 %v649
        %v651 = vpop.xlane.xlu0 %650
        %v652 = vsel %vm597, %v635, 0.0
        %653 = vadd.xlane.f32.xlu0 %v652
        %v654 = vpop.xlane.xlu0 %653
        %v655 = vsel %vm597, %v637, 0.0
        %656 = vadd.xlane.f32.xlu0 %v655
        %v657 = vpop.xlane.xlu0 %656
        %v658 = vsel %vm597, %v639, 0.0
        %659 = vadd.xlane.f32.xlu0 %v658
        %v660 = vpop.xlane.xlu0 %659
        %v661 = vsel %vm597, %v641, 0.0
        %662 = vadd.xlane.f32.xlu0 %v661
        %v663 = vpop.xlane.xlu0 %662
        %v664 = vsel %vm597, %v643, 0.0
        %665 = vadd.xlane.f32.xlu0 %v664
        %v666 = vpop.xlane.xlu0 %665
        %v667 = vsel %vm597, %v645, 0.0
        %668 = vadd.xlane.f32.xlu0 %v667
        %v669 = vpop.xlane.xlu0 %668
        %v670 = vrcp.pop %v648
        %v671 = vrcp.pop %v651
        %v672 = vrcp.pop %v654
        %v673 = vrcp.pop %v657
        %v674 = vrcp.pop %v660
        %v675 = vrcp.pop %v663
        %v676 = vrcp.pop %v666
        %v677 = vrcp.pop %v669
        %v678 = vmul.f32 %v631, %v670
        %v679 = vmul.f32 %v633, %v671
        %v680 = vmul.f32 %v635, %v672
        %v681 = vmul.f32 %v637, %v673
        %v682 = vmul.f32 %v639, %v674
        %v683 = vmul.f32 %v641, %v675
        %v684 = vmul.f32 %v643, %v676
        %v685 = vmul.f32 %v645, %v677
        %v686 = vpack.c.bf16 %v679, %v678
        %v687 = vpack.c.bf16 %v681, %v680
        %v688 = vpack.c.bf16 %v683, %v682
        %v689 = vpack.c.bf16 %v685, %v684
        %v691 = vlaneseq
        %v692 = vshrl.u32 %v691, 7
        %v693 = vsub.s32 0, %v692
        %v694 = vrot.slane %v366, %v693
        %v697 = vsel %vm597, %v686, 0
        %v700 = vsel %vm597, %v687, 0
        %v703 = vsel %vm597, %v688, 0
        %v706 = vsel %vm597, %v689, 0
        %708 = vmatprep.subr.bf16.mxu0 0
        %709 = vmatpush1.bf16.msra.mxu0 %v469
        %710 = vmatprep.subr.bf16.mxu0 0
        %711 = vmatpush1.bf16.msra.mxu0 %v470
        %712 = vmatprep.subr.bf16.mxu0 0
        %713 = vmatpush1.bf16.msra.mxu0 %v471
        %714 = vmatprep.subr.bf16.mxu0 0
        %715 = vmatpush1.bf16.msra.mxu0 %v472
        %716 = vmatprep.subr.bf16.mxu0 0
        %717 = vmatpush1.bf16.msra.mxu0 0
        %718 = vmatprep.subr.bf16.mxu0 0
        %719 = vmatpush1.bf16.msra.mxu0 0
        %720 = vmatprep.subr.bf16.mxu0 0
        %721 = vmatpush1.bf16.msra.mxu0 0
        %722 = vmatprep.subr.bf16.mxu0 0
        %723 = vmatpush1.bf16.msra.mxu0 0
        %724 = vmatprep.subr.bf16.mxu0 0
        %725 = vmatpush1.bf16.msra.mxu0 0
        %726 = vmatprep.subr.bf16.mxu0 0
        %727 = vmatpush1.bf16.msra.mxu0 0
        %728 = vmatprep.subr.bf16.mxu0 0
        %729 = vmatpush1.bf16.msra.mxu0 0
        %730 = vmatprep.subr.bf16.mxu0 0
        %731 = vmatpush1.bf16.msra.mxu0 0
        %732 = vmatprep.subr.bf16.mxu0 0
        %733 = vmatpush1.bf16.msra.mxu0 0
        %734 = vmatprep.subr.bf16.mxu0 0
        %735 = vmatpush1.bf16.msra.mxu0 0
        %736 = vmatprep.subr.bf16.mxu0 0
        %737 = vmatpush1.bf16.msra.mxu0 0
        %738 = vmatprep.subr.bf16.mxu0 0
        %739 = vmatpush1.bf16.msra.mxu0 0
        %740 = vmatprep.mubr.bf16.mxu0 0
        %741 = vmatmul.mubr.bf16.gmra.mrb[0].mxu0 %v697
        %v742 = vpop.f32.mrb[0].mxu0
        %v743 = vadd.f32 %v694, %v742
        %v744 = vpop.f32.mrb[0].mxu0
        %v745 = vpop.f32.mrb[0].mxu0
        %v746 = vadd.f32 %v694, %v745
        %v747 = vpop.f32.mrb[0].mxu0
        %748 = vmatprep.mubr.bf16.mxu0 0
        %749 = vmatmul.mubr.bf16.gmra.mrb[0].mxu0 %v700
        %v750 = vpop.f32.mrb[0].mxu0
        %v751 = vadd.f32 %v694, %v750
        %v752 = vpop.f32.mrb[0].mxu0
        %v753 = vpop.f32.mrb[0].mxu0
        %v754 = vadd.f32 %v694, %v753
        %v755 = vpop.f32.mrb[0].mxu0
        %756 = vmatprep.mubr.bf16.mxu0 0
        %757 = vmatmul.mubr.bf16.gmra.mrb[0].mxu0 %v703
        %v758 = vpop.f32.mrb[0].mxu0
        %v759 = vadd.f32 %v694, %v758
        %v760 = vpop.f32.mrb[0].mxu0
        %v761 = vpop.f32.mrb[0].mxu0
        %v762 = vadd.f32 %v694, %v761
        %v763 = vpop.f32.mrb[0].mxu0
        %764 = vmatprep.mubr.bf16.mxu0 0
        %765 = vmatmul.mubr.bf16.gmra.mrb[0].mxu0 %v706
        %v766 = vpop.f32.mrb[0].mxu0
        %v767 = vadd.f32 %v694, %v766
        %v768 = vpop.f32.mrb[0].mxu0
        %v769 = vpop.f32.mrb[0].mxu0
        %v770 = vadd.f32 %v694, %v769
        %v771 = vpop.f32.mrb[0].mxu0
        %772 = vdwg.mxu0
        %v773 = vmax.f32 %v743, 0.0
        %v774 = vmax.f32 %v746, 0.0
        %v775 = vmax.f32 %v751, 0.0
        %v776 = vmax.f32 %v754, 0.0
        %v777 = vmax.f32 %v759, 0.0
        %v778 = vmax.f32 %v762, 0.0
        %v779 = vmax.f32 %v767, 0.0
        %v780 = vmax.f32 %v770, 0.0
        %v781 = vld [vmem:[#allocation2] sm:$0xf]
        %v782 = vld [vmem:[#allocation2 + $0x4] sm:$0xf]
        %v783 = vld [vmem:[#allocation2 + $0x8] sm:$0xf]
        %v784 = vld [vmem:[#allocation2 + $0xc] sm:$0xf]
        %v785 = vld [vmem:[#allocation2 + $0x10] sm:$0xf]
        %v786 = vld [vmem:[#allocation2 + $0x14] sm:$0xf]
        %v787 = vld [vmem:[#allocation2 + $0x18] sm:$0xf]
        %v788 = vld [vmem:[#allocation2 + $0x1c] sm:$0xf]
        %v789 = vld [vmem:[#allocation2 + $0x20] sm:$0xf]
        %v790 = vld [vmem:[#allocation2 + $0x24] sm:$0xf]
        %v791 = vld [vmem:[#allocation2 + $0x28] sm:$0xf]
        %v792 = vld [vmem:[#allocation2 + $0x2c] sm:$0xf]
        %v793 = vld [vmem:[#allocation2 + $0x30] sm:$0xf]
        %v794 = vld [vmem:[#allocation2 + $0x34] sm:$0xf]
        %v795 = vld [vmem:[#allocation2 + $0x38] sm:$0xf]
        %v796 = vld [vmem:[#allocation2 + $0x3c] sm:$0xf]
        %v797 = vld [vmem:[%s6] sm:$0x1]
        %v798 = vld [vmem:[%s7] sm:$0x1]
        %v799 = vpack.c.bf16 %v774, %v773
        %v800 = vpack.c.bf16 %v776, %v775
        %v801 = vpack.c.bf16 %v778, %v777
        %v802 = vpack.c.bf16 %v780, %v779
        %v819 = vunpack.c.l.b16 %v781
        %v820 = vunpack.c.l.b16 %v782
        %v821 = vunpack.c.l.b16 %v783
        %v822 = vunpack.c.l.b16 %v784
        %v823 = vunpack.c.l.b16 %v785
        %v824 = vunpack.c.l.b16 %v786
        %v825 = vunpack.c.l.b16 %v787
        %v826 = vunpack.c.l.b16 %v788
        %v827 = vunpack.c.l.b16 %v789
        %v828 = vunpack.c.l.b16 %v790
        %v829 = vunpack.c.l.b16 %v791
        %v830 = vunpack.c.l.b16 %v792
        %v831 = vunpack.c.l.b16 %v793
        %v832 = vunpack.c.l.b16 %v794
        %v833 = vunpack.c.l.b16 %v795
        %v834 = vunpack.c.l.b16 %v796
        %v835 = vpack.c.b16 %v820, %v819
        %v836 = vpack.c.b16 %v822, %v821
        %v837 = vpack.c.b16 %v824, %v823
        %v838 = vpack.c.b16 %v826, %v825
        %v839 = vpack.c.b16 %v828, %v827
        %v840 = vpack.c.b16 %v830, %v829
        %v841 = vpack.c.b16 %v832, %v831
        %v842 = vpack.c.b16 %v834, %v833
        %851 = vmatprep.subr.bf16.mxu0 0
        %852 = vmatpush1.bf16.msra.mxu0 %v835
        %853 = vmatprep.subr.bf16.mxu0 0
        %854 = vmatpush1.bf16.msra.mxu0 %v836
        %855 = vmatprep.subr.bf16.mxu0 0
        %856 = vmatpush1.bf16.msra.mxu0 %v837
        %857 = vmatprep.subr.bf16.mxu0 0
        %858 = vmatpush1.bf16.msra.mxu0 %v838
        %859 = vmatprep.subr.bf16.mxu0 0
        %860 = vmatpush1.bf16.msra.mxu0 %v839
        %861 = vmatprep.subr.bf16.mxu0 0
        %862 = vmatpush1.bf16.msra.mxu0 %v840
        %863 = vmatprep.subr.bf16.mxu0 0
        %864 = vmatpush1.bf16.msra.mxu0 %v841
        %865 = vmatprep.subr.bf16.mxu0 0
        %866 = vmatpush1.bf16.msra.mxu0 %v842
        %867 = vmatprep.subr.bf16.mxu0 0
        %868 = vmatpush1.bf16.msra.mxu0 0
        %869 = vmatprep.subr.bf16.mxu0 0
        %870 = vmatpush1.bf16.msra.mxu0 0
        %871 = vmatprep.subr.bf16.mxu0 0
        %872 = vmatpush1.bf16.msra.mxu0 0
        %873 = vmatprep.subr.bf16.mxu0 0
        %874 = vmatpush1.bf16.msra.mxu0 0
        %875 = vmatprep.subr.bf16.mxu0 0
        %876 = vmatpush1.bf16.msra.mxu0 0
        %877 = vmatprep.subr.bf16.mxu0 0
        %878 = vmatpush1.bf16.msra.mxu0 0
        %879 = vmatprep.subr.bf16.mxu0 0
        %880 = vmatpush1.bf16.msra.mxu0 0
        %881 = vmatprep.subr.bf16.mxu0 0
        %882 = vmatpush1.bf16.msra.mxu0 0
        %883 = vmatprep.mubr.bf16.mxu0 0
        %884 = vmatmul.mubr.bf16.gmra.mrb[0].mxu0 %v799
        %v885 = vpop.f32.mrb[0].mxu0
        %v886 = vadd.f32 0.0, %v885
        %v887 = vpop.f32.mrb[0].mxu0
        %v888 = vpop.f32.mrb[0].mxu0
        %v889 = vadd.f32 0.0, %v888
        %v890 = vpop.f32.mrb[0].mxu0
        %891 = vmatprep.mubr.bf16.mxu0 0
        %892 = vmatmul.mubr.bf16.gmra.mrb[0].mxu0 %v800
        %v893 = vpop.f32.mrb[0].mxu0
        %v894 = vadd.f32 0.0, %v893
        %v895 = vpop.f32.mrb[0].mxu0
        %v896 = vpop.f32.mrb[0].mxu0
        %v897 = vadd.f32 0.0, %v896
        %v898 = vpop.f32.mrb[0].mxu0
        %899 = vmatprep.mubr.bf16.mxu0 0
        %900 = vmatmul.mubr.bf16.gmra.mrb[0].mxu0 %v801
        %v901 = vpop.f32.mrb[0].mxu0
        %v902 = vadd.f32 0.0, %v901
        %v903 = vpop.f32.mrb[0].mxu0
        %v904 = vpop.f32.mrb[0].mxu0
        %v905 = vadd.f32 0.0, %v904
        %v906 = vpop.f32.mrb[0].mxu0
        %907 = vmatprep.mubr.bf16.mxu0 0
        %908 = vmatmul.mubr.bf16.gmra.mrb[0].mxu0 %v802
        %v909 = vpop.f32.mrb[0].mxu0
        %v910 = vadd.f32 0.0, %v909
        %v911 = vpop.f32.mrb[0].mxu0
        %v912 = vpop.f32.mrb[0].mxu0
        %v913 = vadd.f32 0.0, %v912
        %v914 = vpop.f32.mrb[0].mxu0
        %915 = vdwg.mxu0
        %v916 = vpack.c.bf16 %v889, %v886
        %v917 = vpack.c.bf16 %v897, %v894
        %v918 = vpack.c.bf16 %v905, %v902
        %v919 = vpack.c.bf16 %v913, %v910
        %920 = vmatprep.subr.bf16.mxu0 0
        %921 = vmatpush1.bf16.xpose.msra.mxu0 %v916
        %922 = vmatprep.subr.bf16.mxu0 0
        %923 = vmatpush1.bf16.xpose.msra.mxu0 %v917
        %924 = vmatprep.subr.bf16.mxu0 0
        %925 = vmatpush1.bf16.xpose.msra.mxu0 %v918
        %926 = vmatprep.subr.bf16.mxu0 0
        %927 = vmatpush1.bf16.xpose.msra.mxu0 %v919
        %928 = vmatprep.subr.bf16.mxu0 0
        %929 = vmatpush1.bf16.xpose.msra.mxu0 0
        %930 = vmatprep.subr.bf16.mxu0 0
        %931 = vmatpush1.bf16.xpose.msra.mxu0 0
        %932 = vmatprep.subr.bf16.mxu0 0
        %933 = vmatpush1.bf16.xpose.msra.mxu0 0
        %934 = vmatprep.subr.bf16.mxu0 0
        %935 = vmatpush1.bf16.xpose.msra.mxu0 0
        %936 = vmatprep.subr.bf16.mxu0 0
        %937 = vmatpush1.bf16.xpose.msra.mxu0 0
        %938 = vmatprep.subr.bf16.mxu0 0
        %939 = vmatpush1.bf16.xpose.msra.mxu0 0
        %940 = vmatprep.subr.bf16.mxu0 0
        %941 = vmatpush1.bf16.xpose.msra.mxu0 0
        %942 = vmatprep.subr.bf16.mxu0 0
        %943 = vmatpush1.bf16.xpose.msra.mxu0 0
        %944 = vmatprep.subr.bf16.mxu0 0
        %945 = vmatpush1.bf16.xpose.msra.mxu0 0
        %946 = vmatprep.subr.bf16.mxu0 0
        %947 = vmatpush1.bf16.xpose.msra.mxu0 0
        %948 = vmatprep.subr.bf16.mxu0 0
        %949 = vmatpush1.bf16.xpose.msra.mxu0 0
        %950 = vmatprep.subr.bf16.mxu0 0
        %951 = vmatpush1.bf16.xpose.msra.mxu0 0
        %952 = vmatprep.mubr.bf16.mxu0 0
        %953 = vmatmul.mubr.bf16.gmra.mrb[0].mxu0 %v797
        %v954 = vpop.f32.mrb[0].mxu0
        %v955 = vadd.f32 0.0, %v954
        %v956 = vpop.f32.mrb[0].mxu0
        %v957 = vpop.f32.mrb[0].mxu0
        %v958 = vpop.f32.mrb[0].mxu0
        %959 = vdwg.mxu0
        %961 = vset.pattern.permute.xlu0 127
        %962 = vperm.xlu0 %961, %v886
        %v963 = vpop.permute.xlu0 %962
        %966 = vset.pattern.permute.xlu0 127
        %967 = vperm.xlu0 %966, %v889
        %v968 = vpop.permute.xlu0 %967
        %971 = vset.pattern.permute.xlu0 127
        %972 = vperm.xlu0 %971, %v894
        %v973 = vpop.permute.xlu0 %972
        %976 = vset.pattern.permute.xlu0 127
        %977 = vperm.xlu0 %976, %v897
        %v978 = vpop.permute.xlu0 %977
        %981 = vset.pattern.permute.xlu0 127
        %982 = vperm.xlu0 %981, %v902
        %v983 = vpop.permute.xlu0 %982
        %986 = vset.pattern.permute.xlu0 127
        %987 = vperm.xlu0 %986, %v905
        %v988 = vpop.permute.xlu0 %987
        %991 = vset.pattern.permute.xlu0 127
        %992 = vperm.xlu0 %991, %v910
        %v993 = vpop.permute.xlu0 %992
        %996 = vset.pattern.permute.xlu0 127
        %997 = vperm.xlu0 %996, %v913
        %v998 = vpop.permute.xlu0 %997
        %v1000 = vlaneseq
        %v1001 = vshrl.u32 %v1000, 7
        %v1002 = vsub.s32 0, %v1001
        %v1003 = vrot.slane %v955, %v1002
        %v1004 = vadd.f32 %v963, %v1003
        %v1005 = vadd.f32 %v968, %v1003
        %v1006 = vadd.f32 %v973, %v1003
        %v1007 = vadd.f32 %v978, %v1003
        %v1008 = vadd.f32 %v983, %v1003
        %v1009 = vadd.f32 %v988, %v1003
        %v1010 = vadd.f32 %v993, %v1003
        %v1011 = vadd.f32 %v998, %v1003
        %vm1012 = vcmp.ge.f32.partialorder %v1004, 0.0
        %vm1013 = vcmp.ge.f32.partialorder %v1005, 0.0
        %vm1014 = vcmp.ge.f32.partialorder %v1006, 0.0
        %vm1015 = vcmp.ge.f32.partialorder %v1007, 0.0
        %vm1016 = vcmp.ge.f32.partialorder %v1008, 0.0
        %vm1017 = vcmp.ge.f32.partialorder %v1009, 0.0
        %vm1018 = vcmp.ge.f32.partialorder %v1010, 0.0
        %vm1019 = vcmp.ge.f32.partialorder %v1011, 0.0
        %v1020 = vmul.f32 %v1004, 0.2
        %v1021 = vmul.f32 %v1005, 0.2
        %v1022 = vmul.f32 %v1006, 0.2
        %v1023 = vmul.f32 %v1007, 0.2
        %v1024 = vmul.f32 %v1008, 0.2
        %v1025 = vmul.f32 %v1009, 0.2
        %v1026 = vmul.f32 %v1010, 0.2
        %v1027 = vmul.f32 %v1011, 0.2
        %v1028 = vsel %vm1012, %v1004, %v1020
        %v1029 = vsel %vm1013, %v1005, %v1021
        %v1030 = vsel %vm1014, %v1006, %v1022
        %v1031 = vsel %vm1015, %v1007, %v1023
        %v1032 = vsel %vm1016, %v1008, %v1024
        %v1033 = vsel %vm1017, %v1009, %v1025
        %v1034 = vsel %vm1018, %v1010, %v1026
        %v1035 = vsel %vm1019, %v1011, %v1027
        %v1036 = vadd.f32 %v1028, %v348
        %v1037 = vadd.f32 %v1029, %v349
        %v1038 = vadd.f32 %v1030, %v350
        %v1039 = vadd.f32 %v1031, %v351
        %v1040 = vadd.f32 %v1032, %v352
        %v1041 = vadd.f32 %v1033, %v353
        %v1042 = vadd.f32 %v1034, %v354
        %v1043 = vadd.f32 %v1035, %v355
        %v1044 = vsel %vm597, %v1036, -inf
        %1045 = vmax.xlane.f32.xlu0 %v1044
        %v1046 = vpop.xlane.xlu0 %1045
        %v1047 = vsel %vm597, %v1037, -inf
        %1048 = vmax.xlane.f32.xlu0 %v1047
        %v1049 = vpop.xlane.xlu0 %1048
        %v1050 = vsel %vm597, %v1038, -inf
        %1051 = vmax.xlane.f32.xlu0 %v1050
        %v1052 = vpop.xlane.xlu0 %1051
        %v1053 = vsel %vm597, %v1039, -inf
        %1054 = vmax.xlane.f32.xlu0 %v1053
        %v1055 = vpop.xlane.xlu0 %1054
        %v1056 = vsel %vm597, %v1040, -inf
        %1057 = vmax.xlane.f32.xlu0 %v1056
        %v1058 = vpop.xlane.xlu0 %1057
        %v1059 = vsel %vm597, %v1041, -inf
        %1060 = vmax.xlane.f32.xlu0 %v1059
        %v1061 = vpop.xlane.xlu0 %1060
        %v1062 = vsel %vm597, %v1042, -inf
        %1063 = vmax.xlane.f32.xlu0 %v1062
        %v1064 = vpop.xlane.xlu0 %1063
        %v1065 = vsel %vm597, %v1043, -inf
        %1066 = vmax.xlane.f32.xlu0 %v1065
        %v1067 = vpop.xlane.xlu0 %1066
        %v1068 = vsub.f32 %v1036, %v1046
        %v1069 = vsub.f32 %v1037, %v1049
        %v1070 = vsub.f32 %v1038, %v1052
        %v1071 = vsub.f32 %v1039, %v1055
        %v1072 = vsub.f32 %v1040, %v1058
        %v1073 = vsub.f32 %v1041, %v1061
        %v1074 = vsub.f32 %v1042, %v1064
        %v1075 = vsub.f32 %v1043, %v1067
        %v1076 = vmul.f32 %v1068, 1.442695
        %v1077 = vpow.pop %v1076
        %v1078 = vmul.f32 %v1069, 1.442695
        %v1079 = vpow.pop %v1078
        %v1080 = vmul.f32 %v1070, 1.442695
        %v1081 = vpow.pop %v1080
        %v1082 = vmul.f32 %v1071, 1.442695
        %v1083 = vpow.pop %v1082
        %v1084 = vmul.f32 %v1072, 1.442695
        %v1085 = vpow.pop %v1084
        %v1086 = vmul.f32 %v1073, 1.442695
        %v1087 = vpow.pop %v1086
        %v1088 = vmul.f32 %v1074, 1.442695
        %v1089 = vpow.pop %v1088
        %v1090 = vmul.f32 %v1075, 1.442695
        %v1091 = vpow.pop %v1090
        %v1092 = vsel %vm597, %v1077, 0.0
        %1093 = vadd.xlane.f32.xlu0 %v1092
        %v1094 = vpop.xlane.xlu0 %1093
        %v1095 = vsel %vm597, %v1079, 0.0
        %1096 = vadd.xlane.f32.xlu0 %v1095
        %v1097 = vpop.xlane.xlu0 %1096
        %v1098 = vsel %vm597, %v1081, 0.0
        %1099 = vadd.xlane.f32.xlu0 %v1098
        %v1100 = vpop.xlane.xlu0 %1099
        %v1101 = vsel %vm597, %v1083, 0.0
        %1102 = vadd.xlane.f32.xlu0 %v1101
        %v1103 = vpop.xlane.xlu0 %1102
        %v1104 = vsel %vm597, %v1085, 0.0
        %1105 = vadd.xlane.f32.xlu0 %v1104
        %v1106 = vpop.xlane.xlu0 %1105
        %v1107 = vsel %vm597, %v1087, 0.0
        %1108 = vadd.xlane.f32.xlu0 %v1107
        %v1109 = vpop.xlane.xlu0 %1108
        %v1110 = vsel %vm597, %v1089, 0.0
        %1111 = vadd.xlane.f32.xlu0 %v1110
        %v1112 = vpop.xlane.xlu0 %1111
        %v1113 = vsel %vm597, %v1091, 0.0
        %1114 = vadd.xlane.f32.xlu0 %v1113
        %v1115 = vpop.xlane.xlu0 %1114
        %v1116 = vrcp.pop %v1094
        %v1117 = vrcp.pop %v1097
        %v1118 = vrcp.pop %v1100
        %v1119 = vrcp.pop %v1103
        %v1120 = vrcp.pop %v1106
        %v1121 = vrcp.pop %v1109
        %v1122 = vrcp.pop %v1112
        %v1123 = vrcp.pop %v1115
        %v1124 = vmul.f32 %v1077, %v1116
        %v1125 = vmul.f32 %v1079, %v1117
        %v1126 = vmul.f32 %v1081, %v1118
        %v1127 = vmul.f32 %v1083, %v1119
        %v1128 = vmul.f32 %v1085, %v1120
        %v1129 = vmul.f32 %v1087, %v1121
        %v1130 = vmul.f32 %v1089, %v1122
        %v1131 = vmul.f32 %v1091, %v1123
        %v1132 = vpack.c.bf16 %v1125, %v1124
        %v1133 = vpack.c.bf16 %v1127, %v1126
        %v1134 = vpack.c.bf16 %v1129, %v1128
        %v1135 = vpack.c.bf16 %v1131, %v1130
        %v1137 = vlaneseq
        %v1138 = vshrl.u32 %v1137, 7
        %v1139 = vsub.s32 0, %v1138
        %v1140 = vrot.slane %v798, %v1139
        %v1143 = vsel %vm597, %v1132, 0
        %v1146 = vsel %vm597, %v1133, 0
        %v1149 = vsel %vm597, %v1134, 0
        %v1152 = vsel %vm597, %v1135, 0
        %1154 = vmatprep.subr.bf16.mxu0 0
        %1155 = vmatpush1.bf16.msra.mxu0 %v916
        %1156 = vmatprep.subr.bf16.mxu0 0
        %1157 = vmatpush1.bf16.msra.mxu0 %v917
        %1158 = vmatprep.subr.bf16.mxu0 0
        %1159 = vmatpush1.bf16.msra.mxu0 %v918
        %1160 = vmatprep.subr.bf16.mxu0 0
        %1161 = vmatpush1.bf16.msra.mxu0 %v919
        %1162 = vmatprep.subr.bf16.mxu0 0
        %1163 = vmatpush1.bf16.msra.mxu0 0
        %1164 = vmatprep.subr.bf16.mxu0 0
        %1165 = vmatpush1.bf16.msra.mxu0 0
        %1166 = vmatprep.subr.bf16.mxu0 0
        %1167 = vmatpush1.bf16.msra.mxu0 0
        %1168 = vmatprep.subr.bf16.mxu0 0
        %1169 = vmatpush1.bf16.msra.mxu0 0
        %1170 = vmatprep.subr.bf16.mxu0 0
        %1171 = vmatpush1.bf16.msra.mxu0 0
        %1172 = vmatprep.subr.bf16.mxu0 0
        %1173 = vmatpush1.bf16.msra.mxu0 0
        %1174 = vmatprep.subr.bf16.mxu0 0
        %1175 = vmatpush1.bf16.msra.mxu0 0
        %1176 = vmatprep.subr.bf16.mxu0 0
        %1177 = vmatpush1.bf16.msra.mxu0 0
        %1178 = vmatprep.subr.bf16.mxu0 0
        %1179 = vmatpush1.bf16.msra.mxu0 0
        %1180 = vmatprep.subr.bf16.mxu0 0
        %1181 = vmatpush1.bf16.msra.mxu0 0
        %1182 = vmatprep.subr.bf16.mxu0 0
        %1183 = vmatpush1.bf16.msra.mxu0 0
        %1184 = vmatprep.subr.bf16.mxu0 0
        %1185 = vmatpush1.bf16.msra.mxu0 0
        %1186 = vmatprep.mubr.bf16.mxu0 0
        %1187 = vmatmul.mubr.bf16.gmra.mrb[0].mxu0 %v1143
        %v1188 = vpop.f32.mrb[0].mxu0
        %v1189 = vadd.f32 %v1140, %v1188
        %v1190 = vpop.f32.mrb[0].mxu0
        %v1191 = vpop.f32.mrb[0].mxu0
        %v1192 = vadd.f32 %v1140, %v1191
        %v1193 = vpop.f32.mrb[0].mxu0
        %1194 = vmatprep.mubr.bf16.mxu0 0
        %1195 = vmatmul.mubr.bf16.gmra.mrb[0].mxu0 %v1146
        %v1196 = vpop.f32.mrb[0].mxu0
        %v1197 = vadd.f32 %v1140, %v1196
        %v1198 = vpop.f32.mrb[0].mxu0
        %v1199 = vpop.f32.mrb[0].mxu0
        %v1200 = vadd.f32 %v1140, %v1199
        %v1201 = vpop.f32.mrb[0].mxu0
        %1202 = vmatprep.mubr.bf16.mxu0 0
        %1203 = vmatmul.mubr.bf16.gmra.mrb[0].mxu0 %v1149
        %v1204 = vpop.f32.mrb[0].mxu0
        %v1205 = vadd.f32 %v1140, %v1204
        %v1206 = vpop.f32.mrb[0].mxu0
        %v1207 = vpop.f32.mrb[0].mxu0
        %v1208 = vadd.f32 %v1140, %v1207
        %v1209 = vpop.f32.mrb[0].mxu0
        %1210 = vmatprep.mubr.bf16.mxu0 0
        %1211 = vmatmul.mubr.bf16.gmra.mrb[0].mxu0 %v1152
        %v1212 = vpop.f32.mrb[0].mxu0
        %v1213 = vadd.f32 %v1140, %v1212
        %v1214 = vpop.f32.mrb[0].mxu0
        %v1215 = vpop.f32.mrb[0].mxu0
        %v1216 = vadd.f32 %v1140, %v1215
        %v1217 = vpop.f32.mrb[0].mxu0
        %1218 = vdwg.mxu0
        %1219 = vst [vmem:[%s328] sm:$0xff] %v1189
        %1220 = vst [vmem:[%s328 + $0x8] sm:$0xff] %v1192
        %1221 = vst [vmem:[%s328 + $0x10] sm:$0xff] %v1197
        %1222 = vst [vmem:[%s328 + $0x18] sm:$0xff] %v1200
        %1223 = vst [vmem:[%s328 + $0x20] sm:$0xff] %v1205
        %1224 = vst [vmem:[%s328 + $0x28] sm:$0xff] %v1208
        %1225 = vst [vmem:[%s328 + $0x30] sm:$0xff] %v1213
        %1226 = vst [vmem:[%s328 + $0x38] sm:$0xff] %v1216
        %s1227 = sand.u32 %s209, 1
        %s1228 = scalar_lea.sflag [#allocation4], %s1227
        %s1229 = sand.u32 %s209, 1
        %s1230 = smul.addr %s1229, 64
        %s1231 = scalar_lea.vmem [#allocation5], %s1230
        // Predicated region
        $region57: #{tpu_custom_call.1} parent=51 // pred_check
          %p1232 = pneg %p219
        $region58: #{tpu_custom_call.1} parent=51 // pred_check_branch
          %1234 = sbr.rel (%p1232) target = $region60
        $region59: #{tpu_custom_call.1} parent=51 // pred_region
          %s1236 = ssub.s32 1024, 1024
          %1237 = vsyncadd %s1228, %s1236
          %s1238 = smul.addr %s23, 8
          %s1239 = smul.addr %s1238, 128
          %s1240 = scalar_lea.hbm %s8, %s1239
          %s1241 = sshll.u32 %s1231, 4
          %s1242 = int_to_ptr.vmem [resolvable:$true] %s1241
          %1247 = dma.vmem_to_hbm [thread:$0]  %s1242, 1024, %s1240, %s1228, 128, 128, 8
        $region60: #{tpu_custom_call.1} parent=51 // pred_fallthru
          _
      $region52: #{tpu_custom_call.1} parent=5 // pred_fallthru
        _
      %p1248 = scmp.le.s32.totalorder 2, %s18
      // Predicated region
      $region61: #{tpu_custom_call.1} parent=5 // pred_check
        %p1249 = pneg %p1248
      $region62: #{tpu_custom_call.1} parent=5 // pred_check_branch
        %1251 = sbr.rel (%p1249) target = $region64
      $region63: #{tpu_custom_call.1} parent=5 // pred_region
        %s1252 = ssub.s32 %s18, 2
        // Predicated region
        $region65: #{tpu_custom_call.1} parent=63 // pred_check
          %p1253 = pneg %p225
        $region66: #{tpu_custom_call.1} parent=63 // pred_check_branch
          %1255 = sbr.rel (%p1253) target = $region68
        $region67: #{tpu_custom_call.1} parent=63 // pred_region
          %s1256 = sand.u32 %s210, 1
          %s1257 = scalar_lea.sflag [#allocation4], %s1256
          %s1258 = sand.u32 %s210, 1
          %s1259 = smul.addr %s1258, 64
          %s1260 = scalar_lea.vmem [#allocation5], %s1259
          %1261 = dma.done %s1257, 1024
        $region68: #{tpu_custom_call.1} parent=63 // pred_fallthru
          _
      $region64: #{tpu_custom_call.1} parent=5 // pred_fallthru
        _
    $region6: #{tpu_custom_call.1} parent=1 // loop_footer
      %s22 = sadd.s32 1, %s18
    $region7: #{tpu_custom_call.1} parent=1 // loop_footer_branch
      %17 = sbr.rel target = $region3
    $region8: #{tpu_custom_call.1} parent=1 // loop_exit
      _
    %1262 = vsyncpa [#allocation3], 1
    %s1263 = scalar_lea.sflag [#allocation3], 1
    %1264 = vsyncpa %s1263, 1
    %1265 = vsyncpa [#allocation4], 1
    %s1266 = scalar_lea.sflag [#allocation4], 1
    %1267 = vsyncpa %s1266, 1

</llo_original>
